<compile_context>
chip_gen: v7x
topology: tpu7x:2x2x1
jax: 0.10.0
libtpu: 0.0.40
codegen_flags: <defaults>
</compile_context>

<pallas_src>
import functools

import jax
import jax.numpy as jnp
from jax.experimental import pallas as pl
from jax.experimental.pallas import tpu as pltpu

# Deterministic "parameter" of the module (factor passed to Contrast(...)).
CONTRAST_FACTOR = 1.5

# torchvision rgb_to_grayscale coefficients (float path).
_R_COEF = 0.2989
_G_COEF = 0.587
_B_COEF = 0.114
_COEFS = (_R_COEF, _G_COEF, _B_COEF)

_LANE = 128           # lane width used by the two-pass (spatially tiled) fallback
_HEADROOM = 8 << 20   # VMEM slack left for Mosaic-internal scratch


def _round_up(x, m):
    return ((x + m - 1) // m) * m


def _vmem_capacity_bytes():
    try:
        cap = getattr(pltpu.get_tpu_info(), "vmem_capacity_bytes", None)
        if cap:
            return int(cap)
    except Exception:
        pass
    return 64 << 20     # conservative default (v7x per-TensorCore VMEM)


# -----------------------------------------------------------------------------
# Single-pass path: a multiple-of-8 batch block of whole images resident per step.
# -----------------------------------------------------------------------------
def _contrast_kernel(img_ref, out_ref, *, factor, hw, inv_hw):
    # img_ref / out_ref: (NB, 3*HW) block, lane-dense along the flattened C*H*W axis.
    # Per-image grayscale mean from per-channel partial sums (static lane slices); each
    # channel slab is reduced immediately, so nothing large stays live across the XLU
    # reduction.
    s = None
    for c, coef in enumerate(_COEFS):
        ch = img_ref[:, pl.ds(c * hw, hw)].astype(jnp.float32)      # (NB, HW)
        part = coef * jnp.sum(ch, axis=-1, keepdims=True)           # (NB, 1)
        s = part if s is None else s + part
    bias = (1.0 - factor) * (s * inv_hw)                            # (NB, 1)
    # Blend + clamp + store as ONE whole-block expression -> single unmasked store.
    x = img_ref[...].astype(jnp.float32)                            # (NB, 3*HW)
    out_ref[...] = jnp.clip(factor * x + bias, 0.0, 1.0).astype(out_ref.dtype)


def _contrast_single_pass(flat, factor, hw, capacity, budget):
    N, L = flat.shape
    itemsize = flat.dtype.itemsize
    lane_bytes = _round_up(L, 128) * itemsize          # one image row, lane-padded

    # Largest batch block whose sublane-padded footprint fits the per-block budget.
    cap_nb = max(8, (budget // lane_bytes) // 8 * 8)
    target = min(N, cap_nb)
    if N > 1:
        # Keep >= 2 grid steps so both TensorCores get work on v7x.
        target = max(1, min(target, pl.cdiv(N, 2)))
    # Legalize: the block's second-minor dim must be a multiple of 8 or the full batch.
    if target >= 8:
        nb = (target // 8) * 8
    elif N <= 8:
        # TODO(synk): tiny batches of large images run as one grid step (no megacore
        # split); an NB=1 (rows, 128)-presented variant would recover the second core.
        nb = N
    else:
        nb = 8

    padded_block = _round_up(nb, 8) * lane_bytes       # real per-buffer VMEM footprint
    vmem_limit = max(32 << 20,
                     min(4 * padded_block + _HEADROOM, int(capacity * 0.85)))

    kernel = functools.partial(_contrast_kernel, factor=float(factor),
                               hw=hw, inv_hw=1.0 / float(hw))
    # TODO(synk): pass input_output_aliases={0: 0} when the caller is known not to need
    # the original image afterwards (saves the separate HBM output allocation).
    # NOTE: pipeline_mode=pl.Buffered(3) on the input spec is a possible sweep on the
    # 128 MiB-VMEM parts; left at the default depth here.
    return pl.pallas_call(
        kernel,
        out_shape=jax.ShapeDtypeStruct((N, L), flat.dtype),
        grid_spec=pltpu.PrefetchScalarGridSpec(
            num_scalar_prefetch=0,
            grid=(pl.cdiv(N, nb),),
            in_specs=[pl.BlockSpec((nb, L), lambda i: (i, 0))],
            out_specs=pl.BlockSpec((nb, L), lambda i: (i, 0)),
        ),
        compiler_params=pltpu.CompilerParams(
            dimension_semantics=("parallel",),
            vmem_limit_bytes=int(vmem_limit)),
    )(flat)


# -----------------------------------------------------------------------------
# Two-pass fallback for images too large to keep resident (e.g. v7x, 64 MiB VMEM):
# pass 1 accumulates per-image grayscale sums over (rows x 128) tiles with the batch
# axis parallel; pass 2 does the tiled blend+clamp with the per-image bias in SMEM.
# -----------------------------------------------------------------------------
def _gray_sum_kernel(img_ref, sums_ref, *, hw, tile_rows, lane):
    # img_ref: (1, TR, LANE) tile of one image's flattened C*H*W pixels;
    # sums_ref: (1, 8, 128) per-image accumulator (only [0, 0, 0] is meaningful).
    t = pl.program_id(1)

    @pl.when(t == 0)
    def _init():
        sums_ref[...] = jnp.zeros_like(sums_ref)

    x = img_ref[...].astype(jnp.float32)
    row = jax.lax.broadcasted_iota(jnp.int32, x.shape, 1)
    col = jax.lax.broadcasted_iota(jnp.int32, x.shape, 2)
    flat_idx = (t * tile_rows + row) * lane + col          # index into the C*H*W axis
    coef = jnp.where(flat_idx < hw, _R_COEF,
                     jnp.where(flat_idx < 2 * hw, _G_COEF, _B_COEF))
    # Mask zero-padding / out-of-range rows of a (possibly partial) last tile.
    contrib = jnp.where(flat_idx < 3 * hw, x * coef, 0.0)
    sums_ref[...] = sums_ref[...] + jnp.sum(contrib)


def _blend_kernel(bias_ref, img_ref, out_ref, *, factor):
    # bias_ref: (N,) f32 resident in SMEM; img_ref / out_ref: (1, TR, LANE) tiles.
    bias = bias_ref[pl.program_id(0)]
    x = img_ref[...].astype(jnp.float32)
    out_ref[...] = jnp.clip(factor * x + bias, 0.0, 1.0).astype(out_ref.dtype)


def _contrast_two_pass(flat, factor, hw, capacity, budget):
    N, L = flat.shape
    itemsize = flat.dtype.itemsize
    lane = _LANE
    l_pad = _round_up(L, lane)
    rows = l_pad // lane
    budget_rows = max(8, (budget // (lane * itemsize)) // 8 * 8)
    tile_rows = min(_round_up(rows, 8), budget_rows)       # always a multiple of 8
    n_tiles = pl.cdiv(rows, tile_rows)
    if l_pad != L:
        flat = jnp.pad(flat, ((0, 0), (0, l_pad - L)))     # zeros: exact for the sums
    img3 = flat.reshape(N, rows, lane)
    block_bytes = tile_rows * lane * itemsize

    sums3 = pl.pallas_call(
        functools.partial(_gray_sum_kernel, hw=hw, tile_rows=tile_rows, lane=lane),
        out_shape=jax.ShapeDtypeStruct((N, 8, 128), jnp.float32),
        grid_spec=pltpu.PrefetchScalarGridSpec(
            num_scalar_prefetch=0,
            grid=(N, n_tiles),
            in_specs=[pl.BlockSpec((1, tile_rows, lane), lambda n, t: (n, t, 0))],
            out_specs=pl.BlockSpec((1, 8, 128), lambda n, t: (n, 0, 0)),
        ),
        compiler_params=pltpu.CompilerParams(
            dimension_semantics=("parallel", "arbitrary"),
            vmem_limit_bytes=int(max(32 << 20,
                                     min(2 * block_bytes + _HEADROOM,
                                         int(capacity * 0.85))))),
    )(img3)

    # Per-image bias, computed once (O(N) work) and kept in SMEM for the whole blend
    # grid. (Plain SMEM input rather than scalar prefetch: equivalent residency, and
    # avoids dtype restrictions on prefetch operands.)
    bias = ((1.0 - float(factor)) / float(hw)) * sums3[:, 0, 0]     # (N,) f32

    out3 = pl.pallas_call(
        functools.partial(_blend_kernel, factor=float(factor)),
        out_shape=jax.ShapeDtypeStruct((N, rows, lane), flat.dtype),
        grid_spec=pltpu.PrefetchScalarGridSpec(
            num_scalar_prefetch=0,
            grid=(N, n_tiles),
            in_specs=[pl.BlockSpec(memory_space=pltpu.MemorySpace.SMEM),
                      pl.BlockSpec((1, tile_rows, lane), lambda n, t: (n, t, 0))],
            out_specs=pl.BlockSpec((1, tile_rows, lane), lambda n, t: (n, t, 0)),
        ),
        compiler_params=pltpu.CompilerParams(
            dimension_semantics=("parallel", "parallel"),
            vmem_limit_bytes=int(max(32 << 20,
                                     min(4 * block_bytes + _HEADROOM,
                                         int(capacity * 0.85))))),
    )(bias, img3)
    return out3.reshape(N, l_pad)[:, :L]


# -----------------------------------------------------------------------------
# Public wrappers
# -----------------------------------------------------------------------------
def adjust_contrast_pallas(img, factor):
    """img: (N, 3, H, W) float in [0, 1]. Returns same shape/dtype."""
    N, C, H, W = img.shape
    assert C == 3, "Contrast kernel expects 3-channel (RGB) NCHW input"
    hw = H * W
    flat = img.reshape(N, C * hw)                       # lane-dense 2-D layout
    itemsize = flat.dtype.itemsize
    lane_bytes = _round_up(C * hw, 128) * itemsize

    capacity = _vmem_capacity_bytes()
    budget = max(4 << 20, capacity // 8)                # preferred per-block size
    # Single-pass is feasible if even a single-image block (sublane-padded to 8 rows),
    # double-buffered for input and output, fits comfortably in this chip's VMEM.
    usable = int(capacity * 0.85) - _HEADROOM
    if 4 * (8 * lane_bytes) <= usable:
        out_flat = _contrast_single_pass(flat, factor, hw, capacity, budget)
    else:
        out_flat = _contrast_two_pass(flat, factor, hw, capacity, budget)
    return out_flat.reshape(N, C, H, W)


def contrast_forward(img_wm_device, factor=CONTRAST_FACTOR):
    """Mirror of Manipulation([Contrast(factor)]).forward: adjusts element 0 of the tuple."""
    # TODO(synk): Manipulation builds its layer list via eval(); only the Contrast(float)
    # layer is implemented here (uint8 integer-path semantics not handled).
    img = img_wm_device[0]
    return adjust_contrast_pallas(img, factor)


def _reference(img, factor):
    # Pure-JAX reference of torchvision adjust_contrast (float path).
    gray = _R_COEF * img[:, 0] + _G_COEF * img[:, 1] + _B_COEF * img[:, 2]
    mean = jnp.mean(gray, axis=(-2, -1), keepdims=True)[:, None]   # (N,1,1,1)
    return jnp.clip(factor * img + (1.0 - factor) * mean, 0.0, 1.0)


if __name__ == "__main__":
    key = jax.random.PRNGKey(0)

    # Primary case: small RGB batch (matches the module's expected input).
    N, C, H, W = 2, 3, 16, 16
    img = jax.random.uniform(key, (N, C, H, W), dtype=jnp.float32)
    img_wm_device = (img, None)                 # only element 0 is used by Manipulation
    out = contrast_forward(img_wm_device, CONTRAST_FACTOR)
    out = jax.block_until_ready(out)
    ref = _reference(img, CONTRAST_FACTOR)
    assert out.shape == (N, C, H, W) and out.dtype == img.dtype
    assert jnp.allclose(out, ref, atol=1e-5, rtol=1e-5)

    # Secondary check: batch large enough for a multi-step grid (NB=8, 2 grid steps).
    img2 = jax.random.uniform(jax.random.PRNGKey(1), (16, 3, 16, 16), dtype=jnp.float32)
    out2 = jax.block_until_ready(adjust_contrast_pallas(img2, CONTRAST_FACTOR))
    assert jnp.allclose(out2, _reference(img2, CONTRAST_FACTOR), atol=1e-5, rtol=1e-5)

    print("KERNEL_OK")
</pallas_src>

<mosaic_0001>
module attributes {stable_mosaic.version = 11 : i64} {
  func.func @_contrast_kernel(%arg0: i32, %arg1: memref<2x768xf32, #tpu.memory_space<vmem>>, %arg2: memref<2x768xf32, #tpu.memory_space<vmem>>) attributes {dimension_semantics = [#tpu.dimension_semantics<parallel>], iteration_bounds = array<i64: 1>, scalar_prefetch = 0 : i64, scratch_operands = 0 : i64, tpu.core_type = #tpu.core_type<tc>, window_params = [{transform_indices = @transform_0, window_bounds = array<i64: 2, 768>}, {transform_indices = @transform_1, window_bounds = array<i64: 2, 768>}]} {
    %c0 = arith.constant 0 : index
    %c0_0 = arith.constant 0 : index
    %0 = vector.load %arg1[%c0, %c0_0] : memref<2x768xf32, #tpu.memory_space<vmem>>, vector<2x256xf32>
    %cst = arith.constant dense<0.000000e+00> : vector<2xf32>
    %1 = vector.multi_reduction <add>, %0, %cst [1] : vector<2x256xf32> to vector<2xf32>
    %2 = vector.shape_cast %1 : vector<2xf32> to vector<2x1xf32>
    %cst_1 = arith.constant 2.989000e-01 : f32
    %3 = vector.broadcast %cst_1 : f32 to vector<2x1xf32>
    %4 = arith.mulf %3, %2 : vector<2x1xf32>
    %c0_2 = arith.constant 0 : index
    %c256 = arith.constant 256 : index
    %5 = vector.load %arg1[%c0_2, %c256] : memref<2x768xf32, #tpu.memory_space<vmem>>, vector<2x256xf32>
    %cst_3 = arith.constant dense<0.000000e+00> : vector<2xf32>
    %6 = vector.multi_reduction <add>, %5, %cst_3 [1] : vector<2x256xf32> to vector<2xf32>
    %7 = vector.shape_cast %6 : vector<2xf32> to vector<2x1xf32>
    %cst_4 = arith.constant 5.870000e-01 : f32
    %8 = vector.broadcast %cst_4 : f32 to vector<2x1xf32>
    %9 = arith.mulf %8, %7 : vector<2x1xf32>
    %10 = arith.addf %4, %9 : vector<2x1xf32>
    %c0_5 = arith.constant 0 : index
    %c512 = arith.constant 512 : index
    %11 = vector.load %arg1[%c0_5, %c512] : memref<2x768xf32, #tpu.memory_space<vmem>>, vector<2x256xf32>
    %cst_6 = arith.constant dense<0.000000e+00> : vector<2xf32>
    %12 = vector.multi_reduction <add>, %11, %cst_6 [1] : vector<2x256xf32> to vector<2xf32>
    %13 = vector.shape_cast %12 : vector<2xf32> to vector<2x1xf32>
    %cst_7 = arith.constant 1.140000e-01 : f32
    %14 = vector.broadcast %cst_7 : f32 to vector<2x1xf32>
    %15 = arith.mulf %14, %13 : vector<2x1xf32>
    %16 = arith.addf %10, %15 : vector<2x1xf32>
    %cst_8 = arith.constant 3.906250e-03 : f32
    %17 = vector.broadcast %cst_8 : f32 to vector<2x1xf32>
    %18 = arith.mulf %16, %17 : vector<2x1xf32>
    %cst_9 = arith.constant -5.000000e-01 : f32
    %19 = vector.broadcast %cst_9 : f32 to vector<2x1xf32>
    %20 = arith.mulf %19, %18 : vector<2x1xf32>
    %c0_10 = arith.constant 0 : index
    %c0_11 = arith.constant 0 : index
    %21 = vector.load %arg1[%c0_10, %c0_11] : memref<2x768xf32, #tpu.memory_space<vmem>>, vector<2x768xf32>
    %cst_12 = arith.constant 1.500000e+00 : f32
    %22 = vector.broadcast %cst_12 : f32 to vector<2x768xf32>
    %23 = arith.mulf %22, %21 : vector<2x768xf32>
    %24 = vector.broadcast %20 : vector<2x1xf32> to vector<2x768xf32>
    %25 = arith.addf %23, %24 : vector<2x768xf32>
    %cst_13 = arith.constant 0.000000e+00 : f32
    %cst_14 = arith.constant 1.000000e+00 : f32
    %26 = vector.broadcast %cst_13 : f32 to vector<2x768xf32>
    %27 = arith.maximumf %26, %25 : vector<2x768xf32>
    %28 = vector.broadcast %cst_14 : f32 to vector<2x768xf32>
    %29 = arith.minimumf %28, %27 : vector<2x768xf32>
    %c0_15 = arith.constant 0 : index
    %c0_16 = arith.constant 0 : index
    %30 = vector.load %arg2[%c0_15, %c0_16] : memref<2x768xf32, #tpu.memory_space<vmem>>, vector<2x768xf32>
    tpu.vector_store %arg2[%c0_15, %c0_16], %29 {strides = array<i32>} : memref<2x768xf32, #tpu.memory_space<vmem>>, vector<2x768xf32>,
    return
  }
  func.func @transform_0(%arg0: i32) -> (i32, i32) {
    %c0_i32 = arith.constant 0 : i32
    %c0_i32_0 = arith.constant 0 : i32
    return %arg0, %c0_i32 : i32, i32
  }
  func.func @transform_1(%arg0: i32) -> (i32, i32) {
    %c0_i32 = arith.constant 0 : i32
    %c0_i32_0 = arith.constant 0 : i32
    return %arg0, %c0_i32 : i32, i32
  }
}

</mosaic_0001>

<llo_original>
// kernel: tpu_custom_call.1
$region0: #{tpu_custom_call.1}
  #allocation0 [shape = 'u32[]', space=smem, size = 0x4, offset = 0x4, fixed_abs, tag = 'smem constant byte address 0x4 - core index']
  #allocation1 [shape = 'u32[144,128]{1,0:T(1,128)}', space=vmem, size = 0x12000, scoped, tag = 'internal scratch']
  %s0 = inlined_call_operand.hbm [shape: f32[2,768], index: 0, kind: input, shape index: {}]
  %s1 = inlined_call_operand.hbm [shape: f32[2,768], index: 1, kind: output, shape index: {}]
  %s2 = sld [smem:[#allocation0]]
  $region18: #{tpu_custom_call.1} parent=0
    _
  %s4 = ssub.s32 1, %s2
  %s5 = scalar_select 0, %s4, %s2
  $region1: #{tpu_custom_call.1} parent=0
    #allocation2 [shape = 'u8[6144]{0}', space=vmem, size = 0x1800, scoped, tag = 'input window, operand 0, single buffered']
    #allocation3 [shape = 's32[1]{0}', space=sflag, size = 0x4, scoped, tag = 'scoped memory for tpu_custom_call.1']
    #allocation4 [shape = 's32[1]{0}', space=sflag, size = 0x4, scoped, tag = 'scoped memory for tpu_custom_call.1']
    #allocation5 [shape = 'u8[6144]{0}', space=vmem, size = 0x1800, scoped, tag = 'output window, operand 0, single buffered']
    %6 = vsyncpa [#allocation3], 0
    %7 = vsyncpa [#allocation4], 0
    // Predicated region
    $region2: #{tpu_custom_call.1} parent=1 // pred_check
      _
    $region3: #{tpu_custom_call.1} parent=1 // pred_check_branch
      %9 = sbr.rel (0) target = $region5
    $region4: #{tpu_custom_call.1} parent=1 // pred_region
      %s11 = ssub.s32 192, 192
      %12 = vsyncadd [#allocation3], %s11
      %s14 = sshll.u32 [#allocation2], 4
      %s15 = int_to_ptr.vmem [resolvable:$true] %s14
      %17 = dma.hbm_to_vmem [thread:$0]  %s0, 192, %s15, [#allocation3]
    $region5: #{tpu_custom_call.1} parent=1 // pred_fallthru
      _
    // Predicated region
    $region6: #{tpu_custom_call.1} parent=1 // pred_check
      _
    $region7: #{tpu_custom_call.1} parent=1 // pred_check_branch
      %19 = sbr.rel (0) target = $region9
    $region8: #{tpu_custom_call.1} parent=1 // pred_region
      %20 = dma.done [#allocation3], 192
    $region9: #{tpu_custom_call.1} parent=1 // pred_fallthru
      _
    %v21 = vld [vmem:[#allocation2] sm:$0xf]
    %v24 = vunpack.c.l.s4 1983009808
    %v25 = vunpack.c.0.s8 %v24
    %v26 = vlaneseq
    %v27 = vshrl.u32 %v26, 7
    %v28 = vsub.s32 %v25, %v27
    %v29 = vrot.slane %v21, %v28
    %v30 = vcombine.high %v29, %v29
    %vm33 = vcmask 1041408
    %v34 = vsel %vm33, %v29, 0.0
    %v35 = vsel %vm33, %v30, 0.0
    %v36 = vadd.f32 %v34, %v35
    %37 = vadd.xlane.f32.xlu0 %v36
    %v38 = vpop.xlane.xlu0 %37
    %v39 = vmul.f32 %v38, 0.2989
    %v40 = vld [vmem:[#allocation2 + $0x4] sm:$0xf]
    %v43 = vunpack.c.l.s4 1983009808
    %v44 = vunpack.c.0.s8 %v43
    %v45 = vlaneseq
    %v46 = vshrl.u32 %v45, 7
    %v47 = vsub.s32 %v44, %v46
    %v48 = vrot.slane %v40, %v47
    %v49 = vcombine.high %v48, %v48
    %v52 = vsel %vm33, %v48, 0.0
    %v53 = vsel %vm33, %v49, 0.0
    %v54 = vadd.f32 %v52, %v53
    %55 = vadd.xlane.f32.xlu0 %v54
    %v56 = vpop.xlane.xlu0 %55
    %v57 = vmul.f32 %v56, 0.587
    %v58 = vadd.f32 %v39, %v57
    %v59 = vld [vmem:[#allocation2 + $0x8] sm:$0xf]
    %v62 = vunpack.c.l.s4 1983009808
    %v63 = vunpack.c.0.s8 %v62
    %v64 = vlaneseq
    %v65 = vshrl.u32 %v64, 7
    %v66 = vsub.s32 %v63, %v65
    %v67 = vrot.slane %v59, %v66
    %v68 = vcombine.high %v67, %v67
    %v71 = vsel %vm33, %v67, 0.0
    %v72 = vsel %vm33, %v68, 0.0
    %v73 = vadd.f32 %v71, %v72
    %74 = vadd.xlane.f32.xlu0 %v73
    %v75 = vpop.xlane.xlu0 %74
    %v76 = vmul.f32 %v75, 0.114
    %v77 = vadd.f32 %v58, %v76
    %v78 = vmul.f32 %v77, 0.00390625
    %v79 = vmul.f32 %v78, -0.5
    %v80 = vld [vmem:[#allocation2] sm:$0xff]
    %v81 = vmul.f32 %v80, 1.5
    %v82 = vmul.f32 %v59, 1.5
    %v85 = vunpack.c.l.s4 269488144
    %v86 = vunpack.c.0.s8 %v85
    %v87 = vlaneseq
    %v88 = vshrl.u32 %v87, 7
    %v89 = vsub.s32 %v86, %v88
    %v90 = vrot.slane %v79, %v89
    %v92 = vadd.f32 %v81, %v90
    %v93 = vadd.f32 %v82, %v90
    %v94 = vmax.f32 %v92, 0.0
    %v95 = vmax.f32 %v93, 0.0
    %v96 = vmin.f32 %v94, 1.0
    %v97 = vmin.f32 %v95, 1.0
    %98 = vst [vmem:[#allocation5] sm:$0xff] %v96
    %99 = vst [vmem:[#allocation5 + $0x8] sm:$0xf] %v97
    // Predicated region
    $region10: #{tpu_custom_call.1} parent=1 // pred_check
      _
    $region11: #{tpu_custom_call.1} parent=1 // pred_check_branch
      %101 = sbr.rel (0) target = $region13
    $region12: #{tpu_custom_call.1} parent=1 // pred_region
      %s103 = ssub.s32 192, 192
      %104 = vsyncadd [#allocation4], %s103
      %s106 = sshll.u32 [#allocation5], 4
      %s107 = int_to_ptr.vmem [resolvable:$true] %s106
      %109 = dma.vmem_to_hbm [thread:$0]  %s107, 192, %s1, [#allocation4]
    $region13: #{tpu_custom_call.1} parent=1 // pred_fallthru
      _
    // Predicated region
    $region14: #{tpu_custom_call.1} parent=1 // pred_check
      _
    $region15: #{tpu_custom_call.1} parent=1 // pred_check_branch
      %111 = sbr.rel (0) target = $region17
    $region16: #{tpu_custom_call.1} parent=1 // pred_region
      %112 = dma.done [#allocation4], 192
    $region17: #{tpu_custom_call.1} parent=1 // pred_fallthru
      _
    %113 = vsyncpa [#allocation3], 1
    %114 = vsyncpa [#allocation4], 1

</llo_original>
